<compile_context>
chip_gen: v5e
topology: v5e:2x2
jax: 0.10.0
libtpu: 0.0.40
codegen_flags: <defaults>
</compile_context>

<pallas_src>
import functools

import jax
import jax.numpy as jnp
from jax.experimental import pallas as pl
from jax.experimental.pallas import tpu as pltpu

BN_EPS = 1e-5
BATCH_TILE = 1024  # rows per grid step


def _nfm_kernel(xp_ref, w1_ref, b1_ref, w2_ref, b2_ref, w3_ref, out_ref,
                *, num_fields, embed_dim):
    xp = xp_ref[...]                                     # [TB, F*E + 1] f32

    # ---- Bi-Interaction pooling from F static lane slices -------------------
    sum_e = None
    sum_sq = None
    for f in range(num_fields):
        e = xp[:, f * embed_dim:(f + 1) * embed_dim]     # [TB, E]
        sum_e = e if sum_e is None else sum_e + e
        sum_sq = e * e if sum_sq is None else sum_sq + e * e
    bi = 0.5 * (sum_e * sum_e - sum_sq)                  # [TB, E]

    # ---- fused FeaturesLinear + linear bias + w_0 + output bias (last lane) -
    fe = num_fields * embed_dim
    lin = xp[:, fe:fe + 1]                               # [TB, 1]

    # ---- MLP (BatchNorm folded into w/b; dropout = eval-mode identity) ------
    h = jnp.dot(bi, w1_ref[...], preferred_element_type=jnp.float32) + b1_ref[...]
    h = jnp.maximum(h, 0.0)
    h = jnp.dot(h, w2_ref[...], preferred_element_type=jnp.float32) + b2_ref[...]
    h = jnp.maximum(h, 0.0)

    # ---- output projection to 1: VPU multiply + lane reduction --------------
    f_out = jnp.sum(h * w3_ref[...], axis=-1, keepdims=True)   # [TB, 1]

    out_ref[...] = jax.nn.sigmoid(lin + f_out)           # [TB, 1]


def nfm_forward(x, params):
    """x: int32 [B, F] raw per-field category indices -> sigmoid output [B, 1]."""
    B, F = x.shape
    idx = x + params["offsets"][None, :]                          # [B, F]

    # --- glue: embedding-table gathers (nn.Embedding lookups) ---------------
    emb = jnp.take(params["embed_table"], idx, axis=0)            # [B, F, E]
    E = emb.shape[-1]
    emb2d = emb.reshape(B, F * E)                                 # lane-dense repack

    lin_w = jnp.take(params["linear_table"], idx, axis=0)[..., 0]  # [B, F]
    lin_total = (jnp.sum(lin_w, axis=1, keepdims=True)
                 + params["linear_bias"] + params["w0"] + params["b3"])  # [B, 1]

    packed = jnp.concatenate([emb2d, lin_total], axis=1).astype(jnp.float32)
    d_in = F * E + 1

    # --- fold eval-mode BatchNorm into the MLP weights (trace time) ---------
    s1 = params["bn1_gamma"] * jax.lax.rsqrt(params["bn1_var"] + BN_EPS)
    w1 = params["w1"] * s1
    b1 = (params["b1"] - params["bn1_mean"]) * s1 + params["bn1_beta"]
    s2 = params["bn2_gamma"] * jax.lax.rsqrt(params["bn2_var"] + BN_EPS)
    w2 = params["w2"] * s2
    b2 = (params["b2"] - params["bn2_mean"]) * s2 + params["bn2_beta"]
    w3 = params["w3"].T                                           # [1, H2]
    H1, H2 = w1.shape[1], w2.shape[1]

    # --- batch tiling --------------------------------------------------------
    tb = BATCH_TILE if B >= BATCH_TILE else max(8, -(-B // 8) * 8)
    num_tiles = pl.cdiv(B, tb)
    b_pad = num_tiles * tb
    if b_pad != B:
        packed = jnp.pad(packed, ((0, b_pad - B), (0, 0)))

    def const(shape):
        return pl.BlockSpec(shape, lambda i: (0,) * len(shape))

    out = pl.pallas_call(
        functools.partial(_nfm_kernel, num_fields=F, embed_dim=E),
        out_shape=jax.ShapeDtypeStruct((b_pad, 1), jnp.float32),
        grid=(num_tiles,),
        in_specs=[
            pl.BlockSpec((tb, d_in), lambda i: (i, 0)),   # packed emb + linear
            const((E, H1)), const((1, H1)),               # layer 1 (BN folded)
            const((H1, H2)), const((1, H2)),              # layer 2 (BN folded)
            const((1, H2)),                               # output row vector
        ],
        out_specs=pl.BlockSpec((tb, 1), lambda i: (i, 0)),
        compiler_params=pltpu.CompilerParams(
            dimension_semantics=("parallel",)),
    )(packed, w1, b1, w2, b2, w3)
    return out[:B]


def nfm_reference(x, params):
    """Pure-JAX reference with explicit pairwise interactions + unfolded BN."""
    idx = x + params["offsets"][None, :]
    emb = params["embed_table"][idx]                              # [B, F, E]
    B, F, E = emb.shape
    inter = jnp.zeros((B, E), jnp.float32)
    for i in range(F):
        for j in range(i + 1, F):
            inter = inter + emb[:, i] * emb[:, j]
    lin = (jnp.sum(params["linear_table"][idx][..., 0], axis=1, keepdims=True)
           + params["linear_bias"])
    h = inter @ params["w1"] + params["b1"]
    h = ((h - params["bn1_mean"]) * jax.lax.rsqrt(params["bn1_var"] + BN_EPS)
         * params["bn1_gamma"] + params["bn1_beta"])
    h = jnp.maximum(h, 0.0)
    h = h @ params["w2"] + params["b2"]
    h = ((h - params["bn2_mean"]) * jax.lax.rsqrt(params["bn2_var"] + BN_EPS)
         * params["bn2_gamma"] + params["bn2_beta"])
    h = jnp.maximum(h, 0.0)
    f_out = h @ params["w3"] + params["b3"]
    return jax.nn.sigmoid(params["w0"] + lin + f_out)


def init_params(key, field_dims, embed_dim, mlp_dims):
    total = int(sum(field_dims))
    offsets = jnp.asarray(
        [0] + list(jnp.cumsum(jnp.asarray(field_dims))[:-1]), dtype=jnp.int32)
    ks = jax.random.split(key, 16)
    H1, H2 = mlp_dims

    def glorot(k, shape):
        lim = (6.0 / (shape[0] + shape[1])) ** 0.5
        return jax.random.uniform(k, shape, jnp.float32, -lim, lim)

    return {
        "offsets": offsets,
        "embed_table": 0.1 * jax.random.normal(ks[0], (total, embed_dim), jnp.float32),
        "linear_table": 0.1 * jax.random.normal(ks[1], (total, 1), jnp.float32),
        "linear_bias": jnp.zeros((1, 1), jnp.float32),
        "w0": jnp.zeros((1, 1), jnp.float32),
        "w1": glorot(ks[2], (embed_dim, H1)),
        "b1": 0.01 * jax.random.normal(ks[3], (1, H1), jnp.float32),
        "bn1_gamma": 1.0 + 0.1 * jax.random.normal(ks[4], (1, H1), jnp.float32),
        "bn1_beta": 0.1 * jax.random.normal(ks[5], (1, H1), jnp.float32),
        "bn1_mean": 0.1 * jax.random.normal(ks[6], (1, H1), jnp.float32),
        "bn1_var": 1.0 + 0.1 * jax.random.uniform(ks[7], (1, H1), jnp.float32),
        "w2": glorot(ks[8], (H1, H2)),
        "b2": 0.01 * jax.random.normal(ks[9], (1, H2), jnp.float32),
        "bn2_gamma": 1.0 + 0.1 * jax.random.normal(ks[10], (1, H2), jnp.float32),
        "bn2_beta": 0.1 * jax.random.normal(ks[11], (1, H2), jnp.float32),
        "bn2_mean": 0.1 * jax.random.normal(ks[12], (1, H2), jnp.float32),
        "bn2_var": 1.0 + 0.1 * jax.random.uniform(ks[13], (1, H2), jnp.float32),
        "w3": glorot(ks[14], (H2, 1)),
        "b3": jnp.zeros((1, 1), jnp.float32),
    }


if __name__ == "__main__":
    key = jax.random.PRNGKey(0)
    field_dims = (10, 12, 8, 14)        # 4 categorical fields
    embed_dim = 16
    mlp_dims = (32, 16)
    batch = 8

    kp, kx = jax.random.split(key)
    params = init_params(kp, field_dims, embed_dim, mlp_dims)

    # per-field indices in [0, field_dim)
    maxes = jnp.asarray(field_dims, dtype=jnp.int32)
    x = (jax.random.randint(kx, (batch, len(field_dims)), 0, 10_000, jnp.int32)
         % maxes[None, :]).astype(jnp.int32)

    fwd = jax.jit(functools.partial(nfm_forward, params=params))
    out = fwd(x)
    jax.block_until_ready(out)

    ref = nfm_reference(x, params)
    assert out.shape == (batch, 1) and out.dtype == jnp.float32
    assert bool(jnp.all(jnp.isfinite(out)))
    assert bool(jnp.all((out >= 0.0) & (out <= 1.0)))
    assert bool(jnp.allclose(out, ref, atol=2e-3, rtol=2e-3)), (
        f"max abs diff {float(jnp.max(jnp.abs(out - ref)))}")
    print("KERNEL_OK")
</pallas_src>

<mosaic_0001>
module attributes {stable_mosaic.version = 11 : i64} {
  func.func @_nfm_kernel(%arg0: i32, %arg1: memref<8x65xf32, #tpu.memory_space<vmem>>, %arg2: memref<16x32xf32, #tpu.memory_space<vmem>>, %arg3: memref<1x32xf32, #tpu.memory_space<vmem>>, %arg4: memref<32x16xf32, #tpu.memory_space<vmem>>, %arg5: memref<1x16xf32, #tpu.memory_space<vmem>>, %arg6: memref<1x16xf32, #tpu.memory_space<vmem>>, %arg7: memref<8x1xf32, #tpu.memory_space<vmem>>) attributes {dimension_semantics = [#tpu.dimension_semantics<parallel>], iteration_bounds = array<i64: 1>, scalar_prefetch = 0 : i64, scratch_operands = 0 : i64, tpu.core_type = #tpu.core_type<tc>, window_params = [{transform_indices = @transform_0, window_bounds = array<i64: 8, 65>}, {pipeline_mode = #tpu.pipeline_mode<synchronous>, transform_indices = @transform_1, window_bounds = array<i64: 16, 32>}, {pipeline_mode = #tpu.pipeline_mode<synchronous>, transform_indices = @transform_2, window_bounds = array<i64: 1, 32>}, {pipeline_mode = #tpu.pipeline_mode<synchronous>, transform_indices = @transform_3, window_bounds = array<i64: 32, 16>}, {pipeline_mode = #tpu.pipeline_mode<synchronous>, transform_indices = @transform_4, window_bounds = array<i64: 1, 16>}, {pipeline_mode = #tpu.pipeline_mode<synchronous>, transform_indices = @transform_5, window_bounds = array<i64: 1, 16>}, {transform_indices = @transform_6, window_bounds = array<i64: 8, 1>}]} {
    %c0 = arith.constant 0 : index
    %c0_0 = arith.constant 0 : index
    %0 = vector.load %arg1[%c0, %c0_0] : memref<8x65xf32, #tpu.memory_space<vmem>>, vector<8x65xf32>
    %1 = vector.extract_strided_slice %0 {offsets = [0, 0], sizes = [8, 16], strides = [1, 1]} : vector<8x65xf32> to vector<8x16xf32>
    %2 = arith.mulf %1, %1 : vector<8x16xf32>
    %3 = vector.extract_strided_slice %0 {offsets = [0, 16], sizes = [8, 16], strides = [1, 1]} : vector<8x65xf32> to vector<8x16xf32>
    %4 = arith.addf %1, %3 : vector<8x16xf32>
    %5 = arith.mulf %3, %3 : vector<8x16xf32>
    %6 = arith.addf %2, %5 : vector<8x16xf32>
    %7 = vector.extract_strided_slice %0 {offsets = [0, 32], sizes = [8, 16], strides = [1, 1]} : vector<8x65xf32> to vector<8x16xf32>
    %8 = arith.addf %4, %7 : vector<8x16xf32>
    %9 = arith.mulf %7, %7 : vector<8x16xf32>
    %10 = arith.addf %6, %9 : vector<8x16xf32>
    %11 = vector.extract_strided_slice %0 {offsets = [0, 48], sizes = [8, 16], strides = [1, 1]} : vector<8x65xf32> to vector<8x16xf32>
    %12 = arith.addf %8, %11 : vector<8x16xf32>
    %13 = arith.mulf %11, %11 : vector<8x16xf32>
    %14 = arith.addf %10, %13 : vector<8x16xf32>
    %15 = arith.mulf %12, %12 : vector<8x16xf32>
    %16 = arith.subf %15, %14 : vector<8x16xf32>
    %cst = arith.constant 5.000000e-01 : f32
    %17 = vector.broadcast %cst : f32 to vector<8x16xf32>
    %18 = arith.mulf %17, %16 : vector<8x16xf32>
    %19 = vector.extract_strided_slice %0 {offsets = [0, 64], sizes = [8, 1], strides = [1, 1]} : vector<8x65xf32> to vector<8x1xf32>
    %c0_1 = arith.constant 0 : index
    %c0_2 = arith.constant 0 : index
    %20 = vector.load %arg2[%c0_1, %c0_2] : memref<16x32xf32, #tpu.memory_space<vmem>>, vector<16x32xf32>
    %cst_3 = arith.constant dense<0.000000e+00> : vector<8x32xf32>
    %21 = tpu.matmul %18, %20, %cst_3 {dimension_numbers = #tpu.dot_dimension_numbers<[1], [0], [0], [1], [0, 0, 1, 1], [], []>} : vector<8x16xf32>, vector<16x32xf32>, vector<8x32xf32> -> vector<8x32xf32>
    %c0_4 = arith.constant 0 : index
    %c0_5 = arith.constant 0 : index
    %22 = vector.load %arg3[%c0_4, %c0_5] : memref<1x32xf32, #tpu.memory_space<vmem>>, vector<1x32xf32>
    %23 = vector.broadcast %22 : vector<1x32xf32> to vector<8x32xf32>
    %24 = arith.addf %21, %23 : vector<8x32xf32>
    %cst_6 = arith.constant 0.000000e+00 : f32
    %25 = vector.broadcast %cst_6 : f32 to vector<8x32xf32>
    %26 = arith.maximumf %24, %25 : vector<8x32xf32>
    %c0_7 = arith.constant 0 : index
    %c0_8 = arith.constant 0 : index
    %27 = vector.load %arg4[%c0_7, %c0_8] : memref<32x16xf32, #tpu.memory_space<vmem>>, vector<32x16xf32>
    %cst_9 = arith.constant dense<0.000000e+00> : vector<8x16xf32>
    %28 = tpu.matmul %26, %27, %cst_9 {dimension_numbers = #tpu.dot_dimension_numbers<[1], [0], [0], [1], [0, 0, 1, 1], [], []>} : vector<8x32xf32>, vector<32x16xf32>, vector<8x16xf32> -> vector<8x16xf32>
    %c0_10 = arith.constant 0 : index
    %c0_11 = arith.constant 0 : index
    %29 = vector.load %arg5[%c0_10, %c0_11] : memref<1x16xf32, #tpu.memory_space<vmem>>, vector<1x16xf32>
    %30 = vector.broadcast %29 : vector<1x16xf32> to vector<8x16xf32>
    %31 = arith.addf %28, %30 : vector<8x16xf32>
    %cst_12 = arith.constant 0.000000e+00 : f32
    %32 = vector.broadcast %cst_12 : f32 to vector<8x16xf32>
    %33 = arith.maximumf %31, %32 : vector<8x16xf32>
    %c0_13 = arith.constant 0 : index
    %c0_14 = arith.constant 0 : index
    %34 = vector.load %arg6[%c0_13, %c0_14] : memref<1x16xf32, #tpu.memory_space<vmem>>, vector<1x16xf32>
    %35 = vector.broadcast %34 : vector<1x16xf32> to vector<8x16xf32>
    %36 = arith.mulf %33, %35 : vector<8x16xf32>
    %cst_15 = arith.constant dense<0.000000e+00> : vector<8xf32>
    %37 = vector.multi_reduction <add>, %36, %cst_15 [1] : vector<8x16xf32> to vector<8xf32>
    %38 = vector.shape_cast %37 : vector<8xf32> to vector<8x1xf32>
    %39 = arith.addf %19, %38 : vector<8x1xf32>
    %40 = arith.negf %39 : vector<8x1xf32>
    %41 = math.exp %40 : vector<8x1xf32>
    %cst_16 = arith.constant 1.000000e+00 : f32
    %42 = vector.broadcast %cst_16 : f32 to vector<8x1xf32>
    %43 = arith.addf %42, %41 : vector<8x1xf32>
    %44 = arith.divf %42, %43 : vector<8x1xf32>
    %c0_17 = arith.constant 0 : index
    %c0_18 = arith.constant 0 : index
    %45 = vector.load %arg7[%c0_17, %c0_18] : memref<8x1xf32, #tpu.memory_space<vmem>>, vector<8x1xf32>
    tpu.vector_store %arg7[%c0_17, %c0_18], %44 {strides = array<i32>} : memref<8x1xf32, #tpu.memory_space<vmem>>, vector<8x1xf32>,
    return
  }
  func.func @transform_0(%arg0: i32) -> (i32, i32) {
    %c0_i32 = arith.constant 0 : i32
    %c0_i32_0 = arith.constant 0 : i32
    return %arg0, %c0_i32 : i32, i32
  }
  func.func @transform_1(%arg0: i32) -> (i32, i32) {
    %c0_i32 = arith.constant 0 : i32
    %c0_i32_0 = arith.constant 0 : i32
    %c0_i32_1 = arith.constant 0 : i32
    return %c0_i32, %c0_i32_0 : i32, i32
  }
  func.func @transform_2(%arg0: i32) -> (i32, i32) {
    %c0_i32 = arith.constant 0 : i32
    %c0_i32_0 = arith.constant 0 : i32
    %c0_i32_1 = arith.constant 0 : i32
    return %c0_i32, %c0_i32_0 : i32, i32
  }
  func.func @transform_3(%arg0: i32) -> (i32, i32) {
    %c0_i32 = arith.constant 0 : i32
    %c0_i32_0 = arith.constant 0 : i32
    %c0_i32_1 = arith.constant 0 : i32
    return %c0_i32, %c0_i32_0 : i32, i32
  }
  func.func @transform_4(%arg0: i32) -> (i32, i32) {
    %c0_i32 = arith.constant 0 : i32
    %c0_i32_0 = arith.constant 0 : i32
    %c0_i32_1 = arith.constant 0 : i32
    return %c0_i32, %c0_i32_0 : i32, i32
  }
  func.func @transform_5(%arg0: i32) -> (i32, i32) {
    %c0_i32 = arith.constant 0 : i32
    %c0_i32_0 = arith.constant 0 : i32
    %c0_i32_1 = arith.constant 0 : i32
    return %c0_i32, %c0_i32_0 : i32, i32
  }
  func.func @transform_6(%arg0: i32) -> (i32, i32) {
    %c0_i32 = arith.constant 0 : i32
    %c0_i32_0 = arith.constant 0 : i32
    return %arg0, %c0_i32 : i32, i32
  }
}

</mosaic_0001>

<llo_original>
// kernel: nfm_forward.1
$region0: #{nfm_forward.1}
  #allocation0 [shape = 'u32[]', space=smem, size = 0x4, offset = 0x4, fixed_abs, tag = 'smem constant byte address 0x4 - core index']
  #allocation1 [shape = 'u32[72,128]{1,0:T(1,128)}', space=vmem, size = 0x9000, scoped, tag = 'internal scratch']
  %s0 = inlined_call_operand.vmem [shape: f32[8,65], index: 0, kind: input, shape index: {}]
  %s1 = inlined_call_operand.vmem [shape: f32[16,32], index: 1, kind: input, shape index: {}]
  %s2 = inlined_call_operand.vmem [shape: f32[1,32], index: 2, kind: input, shape index: {}]
  %s3 = inlined_call_operand.vmem [shape: f32[32,16], index: 3, kind: input, shape index: {}]
  %s4 = inlined_call_operand.vmem [shape: f32[1,16], index: 4, kind: input, shape index: {}]
  %s5 = inlined_call_operand.vmem [shape: f32[1,16], index: 5, kind: input, shape index: {}]
  %s6 = inlined_call_operand.vmem [shape: f32[8,1], index: 6, kind: output, shape index: {}]
  %s7 = sld [smem:[#allocation0]]
  $region34: #{nfm_forward.1} parent=0
    _
  %s9 = ssub.s32 1, %s7
  %s10 = scalar_select 0, %s9, %s7
  // Predicated region
  $region2: #{nfm_forward.1} parent=0 // pred_check
    _
  $region3: #{nfm_forward.1} parent=0 // pred_check_branch
    %12 = sbr.rel (0) target = $region5
  $region4: #{nfm_forward.1} parent=0 // pred_region
    _
  $region5: #{nfm_forward.1} parent=0 // pred_fallthru
    _
  // Predicated region
  $region6: #{nfm_forward.1} parent=0 // pred_check
    _
  $region7: #{nfm_forward.1} parent=0 // pred_check_branch
    %14 = sbr.rel (0) target = $region9
  $region8: #{nfm_forward.1} parent=0 // pred_region
    _
  $region9: #{nfm_forward.1} parent=0 // pred_fallthru
    _
  // Predicated region
  $region10: #{nfm_forward.1} parent=0 // pred_check
    _
  $region11: #{nfm_forward.1} parent=0 // pred_check_branch
    %16 = sbr.rel (0) target = $region13
  $region12: #{nfm_forward.1} parent=0 // pred_region
    _
  $region13: #{nfm_forward.1} parent=0 // pred_fallthru
    _
  // Predicated region
  $region14: #{nfm_forward.1} parent=0 // pred_check
    _
  $region15: #{nfm_forward.1} parent=0 // pred_check_branch
    %18 = sbr.rel (0) target = $region17
  $region16: #{nfm_forward.1} parent=0 // pred_region
    _
  $region17: #{nfm_forward.1} parent=0 // pred_fallthru
    _
  // Predicated region
  $region18: #{nfm_forward.1} parent=0 // pred_check
    _
  $region19: #{nfm_forward.1} parent=0 // pred_check_branch
    %20 = sbr.rel (0) target = $region21
  $region20: #{nfm_forward.1} parent=0 // pred_region
    _
  $region21: #{nfm_forward.1} parent=0 // pred_fallthru
    _
  // Predicated region
  $region22: #{nfm_forward.1} parent=0 // pred_check
    _
  $region23: #{nfm_forward.1} parent=0 // pred_check_branch
    %22 = sbr.rel (0) target = $region25
  $region24: #{nfm_forward.1} parent=0 // pred_region
    _
  $region25: #{nfm_forward.1} parent=0 // pred_fallthru
    _
  %v23 = vld [vmem:[%s0] sm:$0xff]
  %v24 = vmul.f32 %v23, %v23
  %26 = vrot.lane.b32.xlu0 %v23, 112
  %v27 = vpop.permute.xlu0 %26
  %v29 = vadd.f32 %v23, %v27
  %31 = vrot.lane.b32.xlu0 %v24, 112
  %v32 = vpop.permute.xlu0 %31
  %v34 = vadd.f32 %v24, %v32
  %35 = vrot.lane.b32.xlu0 %v23, 96
  %v36 = vpop.permute.xlu0 %35
  %v38 = vadd.f32 %v29, %v36
  %39 = vrot.lane.b32.xlu0 %v24, 96
  %v40 = vpop.permute.xlu0 %39
  %v42 = vadd.f32 %v34, %v40
  %43 = vrot.lane.b32.xlu0 %v23, 80
  %v44 = vpop.permute.xlu0 %43
  %v46 = vadd.f32 %v38, %v44
  %47 = vrot.lane.b32.xlu0 %v24, 80
  %v48 = vpop.permute.xlu0 %47
  %v50 = vadd.f32 %v42, %v48
  %v51 = vmul.f32 %v46, %v46
  %v52 = vsub.f32 %v51, %v50
  %v53 = vmul.f32 %v52, 0.5
  %v54 = vld [vmem:[%s1] sm:$0xff]
  %v55 = vld [vmem:[%s1 + $0x8] sm:$0xff]
  %v56 = vld [vmem:[%s2] sm:$0x1]
  %v58 = vperm.slane %v56, 0
  %vm60 = vcmask 130048
  %v62 = vsel %vm60, %v53, 0
  %64 = vmatpush.msra.mxu0 0.0
  %65 = vmatpush.msra.mxu0 0.0
  %66 = vmatpush.msra.mxu0 0.0
  %67 = vmatpush.msra.mxu0 0.0
  %68 = vmatpush.msra.mxu0 0.0
  %69 = vmatpush.msra.mxu0 0.0
  %70 = vmatpush.msra.mxu0 0.0
  %71 = vmatpush.msra.mxu0 0.0
  %72 = vmatpush.msra.mxu0 0.0
  %73 = vmatpush.msra.mxu0 0.0
  %74 = vmatpush.msra.mxu0 0.0
  %75 = vmatpush.msra.mxu0 0.0
  %76 = vmatpush.msra.mxu0 0.0
  %77 = vmatpush.msra.mxu0 0.0
  %78 = vmatpush.msra.mxu0 %v55
  %79 = vmatpush.msra.mxu0 %v54
  %80 = vmatmul.f32.gmra.mxu0 %v62
  %v81 = vpop.f32.mrf.mxu0
  %v82 = vadd.f32 %v58, %v81
  %83 = vdwg.mxu0
  %v84 = vmax.f32 %v82, 0.0
  %v85 = vld [vmem:[%s3] sm:$0xff]
  %v86 = vld [vmem:[%s3 + $0x8] sm:$0xff]
  %v87 = vld [vmem:[%s3 + $0x10] sm:$0xff]
  %v88 = vld [vmem:[%s3 + $0x18] sm:$0xff]
  %v89 = vld [vmem:[%s4] sm:$0x1]
  %v91 = vperm.slane %v89, 0
  %vm93 = vcmask 261120
  %v95 = vsel %vm93, %v84, 0
  %97 = vmatpush.msra.mxu0 0.0
  %98 = vmatpush.msra.mxu0 0.0
  %99 = vmatpush.msra.mxu0 0.0
  %100 = vmatpush.msra.mxu0 0.0
  %101 = vmatpush.msra.mxu0 0.0
  %102 = vmatpush.msra.mxu0 0.0
  %103 = vmatpush.msra.mxu0 0.0
  %104 = vmatpush.msra.mxu0 0.0
  %105 = vmatpush.msra.mxu0 0.0
  %106 = vmatpush.msra.mxu0 0.0
  %107 = vmatpush.msra.mxu0 0.0
  %108 = vmatpush.msra.mxu0 0.0
  %109 = vmatpush.msra.mxu0 %v88
  %110 = vmatpush.msra.mxu0 %v87
  %111 = vmatpush.msra.mxu0 %v86
  %112 = vmatpush.msra.mxu0 %v85
  %113 = vmatmul.f32.gmra.mxu0 %v95
  %v114 = vpop.f32.mrf.mxu0
  %v115 = vadd.f32 %v91, %v114
  %116 = vdwg.mxu0
  %v117 = vmax.f32 %v115, 0.0
  %v118 = vld [vmem:[%s5] sm:$0x1]
  %v120 = vperm.slane %v118, 0
  %v122 = vmul.f32 %v117, %v120
  %v123 = vsel %vm60, %v122, 0.0
  %124 = vadd.xlane.f32.xlu0 %v123
  %v125 = vpop.xlane.xlu0 %124
  %v126 = vadd.f32 %v23, %v125
  %v127 = vxor.u32 %v126, 2147483648
  %v128 = vmul.f32 %v127, 1.442695
  %v129 = vpow.pop %v128
  %v130 = vadd.f32 %v129, 1.0
  %v131 = vrcp.pop %v130
  %v132 = vmul.f32 %v130, %v131
  %v133 = vsub.f32 1.0, %v132
  %v134 = vmul.f32 %v131, %v133
  %v135 = vadd.f32 %v131, %v134
  %vm136 = vweird.f32 %v130
  %vm137 = vweird.f32 %v131
  %vm138 = vmor %vm136, %vm137
  %v139 = vsel %vm138, %v131, %v135
  %v140 = vand.u32 2147483647, %v130
  %vm141 = vcmp.eq.f32.partialorder %v140, 8.507059e+37
  %v142 = vand.u32 %v130, 2147483648
  %v143 = vor.u32 1.1754944e-38, %v142
  %v144 = vsel %vm141, %v143, %v139
  %v145 = vmul.f32 1.0, %v144
  %147 = vrot.lane.b32.xlu0 %v145, 64
  %v148 = vpop.permute.xlu0 %147
  %vm150 = vcmask 7168
  %151 = vst.msk [vmem:[%s6] sm:$0xff] %vm150, %v148
  // Predicated region
  $region26: #{nfm_forward.1} parent=0 // pred_check
    _
  $region27: #{nfm_forward.1} parent=0 // pred_check_branch
    %153 = sbr.rel (0) target = $region29
  $region28: #{nfm_forward.1} parent=0 // pred_region
    _
  $region29: #{nfm_forward.1} parent=0 // pred_fallthru
    _
  // Predicated region
  $region30: #{nfm_forward.1} parent=0 // pred_check
    _
  $region31: #{nfm_forward.1} parent=0 // pred_check_branch
    %155 = sbr.rel (0) target = $region33
  $region32: #{nfm_forward.1} parent=0 // pred_region
    _
  $region33: #{nfm_forward.1} parent=0 // pred_fallthru
    _

</llo_original>
